<compile_context>
chip_gen: v7x
topology: tpu7x:2x2x1
jax: 0.10.0
libtpu: 0.0.40
codegen_flags: <defaults>
</compile_context>

<pallas_src>
import functools

import jax
import jax.numpy as jnp
from jax.experimental import pallas as pl
from jax.experimental.pallas import tpu as pltpu


def _round_up(a: int, b: int) -> int:
    return ((a + b - 1) // b) * b


def _tpu_memory_budget():
    """(target_block_bytes, vmem_limit_bytes, multi_core), generation-aware."""
    vmem = None
    try:
        info = pltpu.get_tpu_info()
        vmem = getattr(info, "vmem_capacity_bytes", None)
    except Exception:
        vmem = None
    if vmem is not None and vmem >= 96 * 1024 * 1024:
        # v5e / v6e: 128 MiB physical VMEM, single TensorCore per chip.
        return 8 * 1024 * 1024, 96 * 1024 * 1024, False
    # v7x (64 MiB physical VMEM, 2 TensorCores) or unknown: stay conservative.
    return 4 * 1024 * 1024, 48 * 1024 * 1024, True


def _single_pass_fits(hw: int, dtype, vmem_limit_bytes: int) -> bool:
    """Does the minimum (one-sublane-tall) single-pass block fit comfortably?"""
    elem = jnp.dtype(dtype).itemsize
    sublane = max(8, 32 // max(1, elem))
    # Double-buffered in + out blocks plus ~4 f32-sized temporaries per block.
    est = sublane * hw * (4 * elem + 4 * 4)
    return est <= vmem_limit_bytes // 2


def _pick_row_tile(rows: int, hw: int, dtype, target_block_bytes: int,
                   multi_core: bool) -> int:
    """Row tile for the (B*C, H*W) single-pass layout."""
    elem = jnp.dtype(dtype).itemsize
    sublane = max(8, 32 // max(1, elem))        # 8 f32, 16 bf16, 32 int8/fp8
    rows_r = _round_up(rows, sublane)
    # Rows that keep one block's f32 working set near the per-generation target.
    fit = max(sublane,
              ((target_block_bytes // max(1, hw * 4)) // sublane) * sublane)
    tile = min(fit, rows_r)
    steps = -(-rows_r // tile)
    max_steps = rows_r // sublane
    # >= 2 steps so the in/out DMAs pipeline; on the 2-TensorCore part (v7x)
    # aim for >= 4 steps and an even count so the "parallel" axis splits
    # evenly across cores (no whole-block idle on one core).
    min_steps = 4 if multi_core else 2
    steps = max(steps, min(min_steps, max_steps))
    if multi_core and steps > 1 and (steps % 2) and steps < max_steps:
        steps += 1
    tile = min(rows_r, _round_up(-(-rows_r // steps), sublane))
    return tile


def _pick_hw_tile(hw: int, row_tile: int, target_block_bytes: int) -> int:
    """Lane-axis chunk (multiple of 128) for the two-pass (split-H*W) path."""
    hw_r = _round_up(hw, 128)
    fit = max(128, ((target_block_bytes // max(1, row_tile * 4)) // 128) * 128)
    return min(fit, hw_r)


# --------------------------------------------------------------------------
# Single-pass kernel: block (row_tile, H*W), reduce over the lane-dense axis.
# --------------------------------------------------------------------------
def _simam_rows_kernel(x_ref, o_ref, *, e_lambda: float, hw: int):
    # Full-f32 compute keeps parity with the reference.  (For bf16 I/O on
    # v6e/v7x the elementwise tail could stay bf16 — EUP/VPU bf16 — but that
    # is a profile-first micro-opt and the kernel is HBM-bound on v5e/v6e.)
    x = x_ref[...].astype(jnp.float32)
    n = float(hw - 1)
    # One reduction pass over x yields both moments (drops one XLU reduction
    # tree per block); the numerator keeps the exact (x - mu)^2 form.
    sx = jnp.sum(x, axis=-1, keepdims=True)
    sxx = jnp.sum(x * x, axis=-1, keepdims=True)
    mu = sx * (1.0 / hw)
    s = jnp.maximum(sxx - hw * (mu * mu), 0.0)   # == sum((x - mu)^2), clamped
    # Per-row reciprocal on a (tile, 1) column, broadcast-multiplied below:
    # removes the per-element divide from the hot path.
    inv = pl.reciprocal(4.0 * (s / n + e_lambda), approx=False)
    d = (x - mu) ** 2
    o_ref[...] = jax.nn.sigmoid(d * inv + 0.5).astype(o_ref.dtype)


def _simam_single_pass(x2d, out_dtype, e_lambda, hw,
                       target_block_bytes, vmem_limit_bytes, multi_core):
    bc = x2d.shape[0]
    row_tile = _pick_row_tile(bc, hw, x2d.dtype, target_block_bytes, multi_core)
    kernel = functools.partial(_simam_rows_kernel, e_lambda=e_lambda, hw=hw)
    return pl.pallas_call(
        kernel,
        out_shape=jax.ShapeDtypeStruct((bc, hw), out_dtype),
        grid=(pl.cdiv(bc, row_tile),),
        in_specs=[pl.BlockSpec((row_tile, hw), lambda i: (i, 0))],
        out_specs=pl.BlockSpec((row_tile, hw), lambda i: (i, 0)),
        compiler_params=pltpu.CompilerParams(
            dimension_semantics=("parallel",),
            vmem_limit_bytes=vmem_limit_bytes,
        ),
    )(x2d)


# --------------------------------------------------------------------------
# Two-pass path for very large H*W planes: stats pass (accumulate sum and
# sum-of-squares across H*W chunks, finalize to mean + reciprocal), then an
# elementwise apply pass.
# --------------------------------------------------------------------------
def _simam_stats_kernel(x_ref, mu_ref, inv_ref, *, e_lambda: float, hw: int,
                        hw_tile: int, mask_tail: bool):
    # During accumulation mu_ref holds running sum(x) and inv_ref holds
    # running sum(x^2); the last H*W chunk finalizes them to mean and
    # 1 / (4 * (s/n + e_lambda)).
    j = pl.program_id(1)

    @pl.when(j == 0)
    def _():
        mu_ref[...] = jnp.zeros_like(mu_ref)
        inv_ref[...] = jnp.zeros_like(inv_ref)

    x = x_ref[...].astype(jnp.float32)
    if mask_tail:
        col = j * hw_tile + jax.lax.broadcasted_iota(jnp.int32, x.shape, 1)
        x = jnp.where(col < hw, x, 0.0)
    mu_ref[...] += jnp.sum(x, axis=-1, keepdims=True)
    inv_ref[...] += jnp.sum(x * x, axis=-1, keepdims=True)

    @pl.when(j == pl.num_programs(1) - 1)
    def _():
        n = float(hw - 1)
        mu = mu_ref[...] * (1.0 / hw)
        s = jnp.maximum(inv_ref[...] - hw * (mu * mu), 0.0)
        mu_ref[...] = mu
        inv_ref[...] = pl.reciprocal(4.0 * (s / n + e_lambda), approx=False)


def _simam_apply_kernel(x_ref, mu_ref, inv_ref, o_ref):
    x = x_ref[...].astype(jnp.float32)
    d = (x - mu_ref[...]) ** 2
    o_ref[...] = jax.nn.sigmoid(d * inv_ref[...] + 0.5).astype(o_ref.dtype)


def _simam_two_pass(x2d, out_dtype, e_lambda, hw,
                    target_block_bytes, vmem_limit_bytes, multi_core,
                    hw_tile=None):
    bc = x2d.shape[0]
    elem = jnp.dtype(x2d.dtype).itemsize
    row_tile = max(8, 32 // max(1, elem))       # minimum-height row blocks
    if hw_tile is None:
        hw_tile = _pick_hw_tile(hw, row_tile, target_block_bytes)
    num_row_blocks = pl.cdiv(bc, row_tile)
    num_hw_blocks = pl.cdiv(hw, hw_tile)
    mask_tail = (hw % hw_tile) != 0
    compiler_params_stats = pltpu.CompilerParams(
        dimension_semantics=("parallel", "arbitrary"),
        vmem_limit_bytes=vmem_limit_bytes,
    )
    compiler_params_apply = pltpu.CompilerParams(
        dimension_semantics=("parallel", "parallel"),
        vmem_limit_bytes=vmem_limit_bytes,
    )

    stats_kernel = functools.partial(
        _simam_stats_kernel, e_lambda=e_lambda, hw=hw, hw_tile=hw_tile,
        mask_tail=mask_tail)
    mu, inv = pl.pallas_call(
        stats_kernel,
        out_shape=(jax.ShapeDtypeStruct((bc, 1), jnp.float32),
                   jax.ShapeDtypeStruct((bc, 1), jnp.float32)),
        grid=(num_row_blocks, num_hw_blocks),
        in_specs=[pl.BlockSpec((row_tile, hw_tile), lambda i, j: (i, j))],
        out_specs=(pl.BlockSpec((row_tile, 1), lambda i, j: (i, 0)),
                   pl.BlockSpec((row_tile, 1), lambda i, j: (i, 0))),
        compiler_params=compiler_params_stats,
    )(x2d)

    return pl.pallas_call(
        _simam_apply_kernel,
        out_shape=jax.ShapeDtypeStruct((bc, hw), out_dtype),
        grid=(num_row_blocks, num_hw_blocks),
        in_specs=[pl.BlockSpec((row_tile, hw_tile), lambda i, j: (i, j)),
                  pl.BlockSpec((row_tile, 1), lambda i, j: (i, 0)),
                  pl.BlockSpec((row_tile, 1), lambda i, j: (i, 0))],
        out_specs=pl.BlockSpec((row_tile, hw_tile), lambda i, j: (i, j)),
        compiler_params=compiler_params_apply,
    )(x2d, mu, inv)


# --------------------------------------------------------------------------
# Public entry point.
# --------------------------------------------------------------------------
def simam(x: jax.Array, e_lambda: float = 1e-4, *,
          force_two_pass: bool | None = None,
          hw_tile: int | None = None) -> jax.Array:
    """SimAM forward. x: (B, C, H, W). Returns sigmoid(y), same shape/dtype.

    force_two_pass / hw_tile are test/tuning knobs (None = auto).
    """
    b, c, h, w = x.shape
    hw = h * w
    bc = b * c
    x2d = x.reshape(bc, hw)                     # free view, no HBM copy

    target_block_bytes, vmem_limit_bytes, multi_core = _tpu_memory_budget()

    two_pass = force_two_pass
    if two_pass is None:
        two_pass = not _single_pass_fits(hw, x.dtype, vmem_limit_bytes)

    if two_pass:
        out2d = _simam_two_pass(x2d, x.dtype, e_lambda, hw,
                                target_block_bytes, vmem_limit_bytes,
                                multi_core, hw_tile=hw_tile)
    else:
        out2d = _simam_single_pass(x2d, x.dtype, e_lambda, hw,
                                   target_block_bytes, vmem_limit_bytes,
                                   multi_core)
    return out2d.reshape(b, c, h, w)


def simam_reference(x: jax.Array, e_lambda: float = 1e-4) -> jax.Array:
    """Pure-JAX reference mirroring the PyTorch module exactly."""
    n = x.shape[2] * x.shape[3] - 1
    xf = x.astype(jnp.float32)
    d = (xf - xf.mean(axis=(2, 3), keepdims=True)) ** 2
    y = d / (4.0 * (d.sum(axis=(2, 3), keepdims=True) / n + e_lambda)) + 0.5
    return jax.nn.sigmoid(y).astype(x.dtype)


if __name__ == "__main__":
    key = jax.random.PRNGKey(0)
    k1, k2, k3, k4, k5 = jax.random.split(key, 5)

    # Case 1: canonical small NCHW map -> single-pass rows layout.
    x1 = jax.random.normal(k1, (2, 4, 16, 16), dtype=jnp.float32)
    out1 = jax.block_until_ready(simam(x1))
    ref1 = simam_reference(x1)
    assert out1.shape == ref1.shape and out1.dtype == ref1.dtype
    assert jnp.allclose(out1, ref1, atol=1e-5, rtol=1e-5), "case1 mismatch"

    # Case 2: hw < 128 (7x7 late-stage map) -- rows layout, masked lane tail.
    x2 = jax.random.normal(k2, (2, 64, 7, 7), dtype=jnp.float32)
    out2 = jax.block_until_ready(simam(x2))
    ref2 = simam_reference(x2)
    assert jnp.allclose(out2, ref2, atol=1e-5, rtol=1e-5), "case2 mismatch"

    # Case 3: B*C not a multiple of the row tile (15 rows -> partial block,
    # OOB rows discarded on store). Single-pass path.
    x3 = jax.random.normal(k3, (3, 5, 16, 16), dtype=jnp.float32)
    out3 = jax.block_until_ready(simam(x3))
    ref3 = simam_reference(x3)
    assert jnp.allclose(out3, ref3, atol=1e-5, rtol=1e-5), "case3 mismatch"

    # Case 4: force the two-pass (split-H*W) path on a small tensor with a
    # non-multiple-of-128 hw (14*14=196, hw_tile=128 -> 2 chunks with a masked
    # tail) and a non-multiple-of-8 B*C, to exercise the accumulator path.
    x4 = jax.random.normal(k4, (3, 5, 14, 14), dtype=jnp.float32)
    out4 = jax.block_until_ready(simam(x4, force_two_pass=True, hw_tile=128))
    ref4 = simam_reference(x4)
    assert jnp.allclose(out4, ref4, atol=1e-5, rtol=1e-5), "case4 mismatch"

    # Case 5: bf16 I/O (f32 internal compute, cast on store).
    x5 = jax.random.normal(k5, (2, 8, 8, 16), dtype=jnp.float32).astype(jnp.bfloat16)
    out5 = jax.block_until_ready(simam(x5))
    ref5 = simam_reference(x5)
    assert out5.dtype == ref5.dtype
    assert jnp.allclose(out5.astype(jnp.float32), ref5.astype(jnp.float32),
                        atol=1e-2, rtol=1e-2), "case5 mismatch"

    print("KERNEL_OK")
</pallas_src>

<mosaic_0001>
module attributes {stable_mosaic.version = 11 : i64} {
  func.func @_simam_rows_kernel(%arg0: i32, %arg1: memref<8x256xf32, #tpu.memory_space<vmem>>, %arg2: memref<8x256xf32, #tpu.memory_space<vmem>>) attributes {dimension_semantics = [#tpu.dimension_semantics<parallel>], iteration_bounds = array<i64: 1>, scalar_prefetch = 0 : i64, scratch_operands = 0 : i64, tpu.core_type = #tpu.core_type<tc>, window_params = [{transform_indices = @transform_0, window_bounds = array<i64: 8, 256>}, {transform_indices = @transform_1, window_bounds = array<i64: 8, 256>}]} {
    %c0 = arith.constant 0 : index
    %c0_0 = arith.constant 0 : index
    %0 = vector.load %arg1[%c0, %c0_0] : memref<8x256xf32, #tpu.memory_space<vmem>>, vector<8x256xf32>
    %cst = arith.constant dense<0.000000e+00> : vector<8xf32>
    %1 = vector.multi_reduction <add>, %0, %cst [1] : vector<8x256xf32> to vector<8xf32>
    %2 = vector.shape_cast %1 : vector<8xf32> to vector<8x1xf32>
    %3 = arith.mulf %0, %0 : vector<8x256xf32>
    %cst_1 = arith.constant dense<0.000000e+00> : vector<8xf32>
    %4 = vector.multi_reduction <add>, %3, %cst_1 [1] : vector<8x256xf32> to vector<8xf32>
    %5 = vector.shape_cast %4 : vector<8xf32> to vector<8x1xf32>
    %cst_2 = arith.constant 3.906250e-03 : f32
    %6 = vector.broadcast %cst_2 : f32 to vector<8x1xf32>
    %7 = arith.mulf %2, %6 : vector<8x1xf32>
    %8 = arith.mulf %7, %7 : vector<8x1xf32>
    %cst_3 = arith.constant 2.560000e+02 : f32
    %9 = vector.broadcast %cst_3 : f32 to vector<8x1xf32>
    %10 = arith.mulf %9, %8 : vector<8x1xf32>
    %11 = arith.subf %5, %10 : vector<8x1xf32>
    %cst_4 = arith.constant 0.000000e+00 : f32
    %12 = vector.broadcast %cst_4 : f32 to vector<8x1xf32>
    %13 = arith.maximumf %11, %12 : vector<8x1xf32>
    %cst_5 = arith.constant 2.550000e+02 : f32
    %14 = vector.broadcast %cst_5 : f32 to vector<8x1xf32>
    %15 = arith.divf %13, %14 : vector<8x1xf32>
    %cst_6 = arith.constant 9.99999974E-5 : f32
    %16 = vector.broadcast %cst_6 : f32 to vector<8x1xf32>
    %17 = arith.addf %15, %16 : vector<8x1xf32>
    %cst_7 = arith.constant 4.000000e+00 : f32
    %18 = vector.broadcast %cst_7 : f32 to vector<8x1xf32>
    %19 = arith.mulf %18, %17 : vector<8x1xf32>
    %20 = tpu.reciprocal %19 : vector<8x1xf32> -> vector<8x1xf32>
    %21 = vector.broadcast %7 : vector<8x1xf32> to vector<8x256xf32>
    %22 = arith.subf %0, %21 : vector<8x256xf32>
    %23 = arith.mulf %22, %22 : vector<8x256xf32>
    %24 = vector.broadcast %20 : vector<8x1xf32> to vector<8x256xf32>
    %25 = arith.mulf %23, %24 : vector<8x256xf32>
    %cst_8 = arith.constant 5.000000e-01 : f32
    %26 = vector.broadcast %cst_8 : f32 to vector<8x256xf32>
    %27 = arith.addf %25, %26 : vector<8x256xf32>
    %28 = arith.negf %27 : vector<8x256xf32>
    %29 = math.exp %28 : vector<8x256xf32>
    %cst_9 = arith.constant 1.000000e+00 : f32
    %30 = vector.broadcast %cst_9 : f32 to vector<8x256xf32>
    %31 = arith.addf %30, %29 : vector<8x256xf32>
    %32 = arith.divf %30, %31 : vector<8x256xf32>
    %c0_10 = arith.constant 0 : index
    %c0_11 = arith.constant 0 : index
    %33 = vector.load %arg2[%c0_10, %c0_11] : memref<8x256xf32, #tpu.memory_space<vmem>>, vector<8x256xf32>
    tpu.vector_store %arg2[%c0_10, %c0_11], %32 {strides = array<i32>} : memref<8x256xf32, #tpu.memory_space<vmem>>, vector<8x256xf32>,
    return
  }
  func.func @transform_0(%arg0: i32) -> (i32, i32) {
    %c0_i32 = arith.constant 0 : i32
    %c0_i32_0 = arith.constant 0 : i32
    return %arg0, %c0_i32 : i32, i32
  }
  func.func @transform_1(%arg0: i32) -> (i32, i32) {
    %c0_i32 = arith.constant 0 : i32
    %c0_i32_0 = arith.constant 0 : i32
    return %arg0, %c0_i32 : i32, i32
  }
}

</mosaic_0001>

<llo_original>
// kernel: tpu_custom_call.1
$region0: #{tpu_custom_call.1}
  #allocation0 [shape = 'u32[]', space=smem, size = 0x4, offset = 0x4, fixed_abs, tag = 'smem constant byte address 0x4 - core index']
  #allocation1 [shape = 'u32[144,128]{1,0:T(1,128)}', space=vmem, size = 0x12000, scoped, tag = 'internal scratch']
  %s0 = inlined_call_operand.hbm [shape: f32[8,256], index: 0, kind: input, shape index: {}]
  %s1 = inlined_call_operand.hbm [shape: f32[8,256], index: 1, kind: output, shape index: {}]
  %s2 = sld [smem:[#allocation0]]
  $region18: #{tpu_custom_call.1} parent=0
    _
  %s4 = ssub.s32 1, %s2
  %s5 = scalar_select 0, %s4, %s2
  $region1: #{tpu_custom_call.1} parent=0
    #allocation2 [shape = 'u8[8192]{0}', space=vmem, size = 0x2000, scoped, tag = 'input window, operand 0, single buffered']
    #allocation3 [shape = 's32[1]{0}', space=sflag, size = 0x4, scoped, tag = 'scoped memory for tpu_custom_call.1']
    #allocation4 [shape = 's32[1]{0}', space=sflag, size = 0x4, scoped, tag = 'scoped memory for tpu_custom_call.1']
    #allocation5 [shape = 'u8[8192]{0}', space=vmem, size = 0x2000, scoped, tag = 'output window, operand 0, single buffered']
    %6 = vsyncpa [#allocation3], 0
    %7 = vsyncpa [#allocation4], 0
    // Predicated region
    $region2: #{tpu_custom_call.1} parent=1 // pred_check
      _
    $region3: #{tpu_custom_call.1} parent=1 // pred_check_branch
      %9 = sbr.rel (0) target = $region5
    $region4: #{tpu_custom_call.1} parent=1 // pred_region
      %s11 = ssub.s32 256, 256
      %12 = vsyncadd [#allocation3], %s11
      %s14 = sshll.u32 [#allocation2], 4
      %s15 = int_to_ptr.vmem [resolvable:$true] %s14
      %17 = dma.hbm_to_vmem [thread:$0]  %s0, 256, %s15, [#allocation3]
    $region5: #{tpu_custom_call.1} parent=1 // pred_fallthru
      _
    // Predicated region
    $region6: #{tpu_custom_call.1} parent=1 // pred_check
      _
    $region7: #{tpu_custom_call.1} parent=1 // pred_check_branch
      %19 = sbr.rel (0) target = $region9
    $region8: #{tpu_custom_call.1} parent=1 // pred_region
      %20 = dma.done [#allocation3], 256
    $region9: #{tpu_custom_call.1} parent=1 // pred_fallthru
      _
    %v21 = vld [vmem:[#allocation2] sm:$0xff]
    %v22 = vld [vmem:[#allocation2 + $0x8] sm:$0xff]
    %v23 = vadd.f32 %v21, %v22
    %24 = vadd.xlane.f32.xlu0 %v23
    %v25 = vpop.xlane.xlu0 %24
    %v26 = vmul.f32 %v21, %v21
    %v27 = vmul.f32 %v22, %v22
    %v28 = vadd.f32 %v26, %v27
    %29 = vadd.xlane.f32.xlu0 %v28
    %v30 = vpop.xlane.xlu0 %29
    %v31 = vmul.f32 %v25, 0.00390625
    %v32 = vmul.f32 %v31, %v31
    %v33 = vmul.f32 %v32, 256.0
    %v34 = vsub.f32 %v30, %v33
    %v35 = vmax.f32 %v34, 0.0
    %v36 = vrcp.pop 255.0
    %v37 = vmul.f32 %v35, %v36
    %v38 = vadd.f32 %v37, 0.0001
    %v39 = vmul.f32 %v38, 4.0
    %v40 = vrcp.pop %v39
    %v41 = vsub.f32 %v21, %v31
    %v42 = vsub.f32 %v22, %v31
    %v43 = vmul.f32 %v41, %v41
    %v44 = vmul.f32 %v42, %v42
    %v45 = vmul.f32 %v43, %v40
    %v46 = vmul.f32 %v44, %v40
    %v47 = vadd.f32 %v45, 0.5
    %v48 = vadd.f32 %v46, 0.5
    %v49 = vxor.u32 %v47, 2147483648
    %v50 = vxor.u32 %v48, 2147483648
    %v51 = vmul.f32 %v49, 1.442695
    %v52 = vpow.pop %v51
    %v53 = vmul.f32 %v50, 1.442695
    %v54 = vpow.pop %v53
    %v55 = vadd.f32 %v52, 1.0
    %v56 = vadd.f32 %v54, 1.0
    %v57 = vrcp.pop %v55
    %v58 = vmul.f32 1.0, %v57
    %v59 = vrcp.pop %v56
    %v60 = vmul.f32 1.0, %v59
    %61 = vst [vmem:[#allocation5] sm:$0xff] %v58
    %62 = vst [vmem:[#allocation5 + $0x8] sm:$0xff] %v60
    // Predicated region
    $region10: #{tpu_custom_call.1} parent=1 // pred_check
      _
    $region11: #{tpu_custom_call.1} parent=1 // pred_check_branch
      %64 = sbr.rel (0) target = $region13
    $region12: #{tpu_custom_call.1} parent=1 // pred_region
      %s66 = ssub.s32 256, 256
      %67 = vsyncadd [#allocation4], %s66
      %s69 = sshll.u32 [#allocation5], 4
      %s70 = int_to_ptr.vmem [resolvable:$true] %s69
      %72 = dma.vmem_to_hbm [thread:$0]  %s70, 256, %s1, [#allocation4]
    $region13: #{tpu_custom_call.1} parent=1 // pred_fallthru
      _
    // Predicated region
    $region14: #{tpu_custom_call.1} parent=1 // pred_check
      _
    $region15: #{tpu_custom_call.1} parent=1 // pred_check_branch
      %74 = sbr.rel (0) target = $region17
    $region16: #{tpu_custom_call.1} parent=1 // pred_region
      %75 = dma.done [#allocation4], 256
    $region17: #{tpu_custom_call.1} parent=1 // pred_fallthru
      _
    %76 = vsyncpa [#allocation3], 1
    %77 = vsyncpa [#allocation4], 1

</llo_original>
